<compile_context>
chip_gen: v5e
topology: v5e:2x2
jax: 0.10.0
libtpu: 0.0.40
codegen_flags: <defaults>
</compile_context>

<pallas_src>
import jax
import jax.numpy as jnp
from jax.experimental import pallas as pl
from jax.experimental.pallas import tpu as pltpu

LANE = 128                    # TPU lane width; Cout padded to a multiple of this.
SMALL_CIN = 32                # Cin <= SMALL_CIN -> wrapper im2col path.
ACC_CHUNK_BYTES = 256 * 1024  # target live f32 accumulator chunk (~64 vregs).


def _round_up(x, m):
    return (x + m - 1) // m * m


def _row_chunk(TH, W, cout_p):
    """Rows per M-chunk so the live f32 accumulator stays near the vreg budget
    (capped at >= TH/8 rows to bound unrolled code size)."""
    base = max(1, ACC_CHUNK_BYTES // max(1, W * cout_p * 4))
    return min(TH, max(base, -(-TH // 8)))


def _vmem_budget():
    """Per-generation per-step VMEM budget (v7x 64 MiB -> ~48 MiB; v5e/v6e
    128 MiB -> ~100 MiB)."""
    try:
        phys = int(pltpu.get_tpu_info().vmem_capacity_bytes)
    except Exception:
        phys = 64 * 1024 * 1024  # conservative (v7x-sized) fallback
    return max(16 << 20, min(phys - (16 << 20), 100 << 20))


# --------------------------------------------------------------------------- #
# Kernels
# --------------------------------------------------------------------------- #
def _im2col_kernel(x_ref, w_ref, b_ref, o_ref):
    """Small-Cin path: one K=9*Cin MXU matmul per (batch, H-tile).

    x_ref: (1, TH, W, 9*Cin)   im2col'd input tile
    w_ref: (9*Cin, Cout_p)     resident weights
    b_ref: (1, Cout_p)         f32 bias
    o_ref: (1, TH, W, Cout_p)  lane-dense output tile
    """
    _, TH, W, K = x_ref.shape
    Cout_p = o_ref.shape[3]
    patch = x_ref[...].reshape(TH * W, K)
    acc = jnp.dot(patch, w_ref[...], preferred_element_type=jnp.float32)
    y = jnp.maximum(acc + b_ref[...], 0.0)                       # bias + ReLU, f32
    o_ref[...] = y.reshape(1, TH, W, Cout_p).astype(o_ref.dtype)


def _make_general_kernel(TH, W, Cin, Cout_p, fold_kw, row_chunk):
    """General path: manual double-buffered DMA of the halo'd (TH+2)-row window
    from HBM + register accumulation (bias-initialised).  kw taps are folded to
    one K=3*Cin contraction when Cin is lane-aligned."""

    def kernel(x_hbm, w_ref, b_ref, o_ref, xbuf, sem):
        b = pl.program_id(0)
        t = pl.program_id(1)
        nt = pl.num_programs(1)
        slot = t % 2

        def start_fetch(tt, s):
            pltpu.make_async_copy(
                x_hbm.at[b, pl.ds(tt * TH, TH + 2)], xbuf.at[s], sem.at[s]
            ).start()

        # Prime the double buffer on the first H-tile of each image (the t axis
        # is "arbitrary", so this state legally carries across grid steps).
        @pl.when(t == 0)
        def _():
            start_fetch(t, slot)

        # Wait for the current window (started here at t==0, else at step t-1).
        pltpu.make_async_copy(
            x_hbm.at[b, pl.ds(t * TH, TH + 2)], xbuf.at[slot], sem.at[slot]
        ).wait()

        # Prefetch the next window while computing on this one.
        @pl.when(t + 1 < nt)
        def _():
            start_fetch(t + 1, 1 - slot)

        x = xbuf[slot]                               # (TH+2, W+2, Cin)
        bias = b_ref[...].astype(jnp.float32)        # (1, Cout_p)

        # Hoist the weight loads out of the unrolled chunk loop.
        if fold_kw:
            w_taps = [w_ref[kh] for kh in range(3)]              # (3*Cin, Cout_p)
        else:
            w_taps = [[w_ref[kh, kw] for kw in range(3)] for kh in range(3)]

        # M-blocked register accumulation: each chunk's accumulator lives in
        # vregs / MRB and is stored to the output exactly once.
        for r0 in range(0, TH, row_chunk):
            rc = min(row_chunk, TH - r0)
            acc = jnp.broadcast_to(bias, (rc * W, Cout_p))       # bias-init acc
            for kh in range(3):
                rows = x[r0 + kh: r0 + kh + rc]                  # (rc, W+2, Cin)
                if fold_kw:
                    # TODO(synk): replace the sublane-offset slices with
                    # pltpu.roll along W for packed bf16 feeds.
                    patch = jnp.concatenate(
                        [rows[:, 0:W], rows[:, 1:W + 1], rows[:, 2:W + 2]],
                        axis=-1).reshape(rc * W, 3 * Cin)
                    acc = acc + jnp.dot(patch, w_taps[kh],
                                        preferred_element_type=jnp.float32)
                else:
                    for kw in range(3):
                        patch = rows[:, kw:kw + W].reshape(rc * W, Cin)
                        acc = acc + jnp.dot(patch, w_taps[kh][kw],
                                            preferred_element_type=jnp.float32)
            y = jnp.maximum(acc, 0.0)                            # ReLU, f32
            o_ref[:, r0:r0 + rc, :, :] = (
                y.reshape(1, rc, W, Cout_p).astype(o_ref.dtype))

    return kernel


# --------------------------------------------------------------------------- #
# Parameter packing (hoist this once per parameter set in a full model)
# --------------------------------------------------------------------------- #
def _pack_params(weight_oihw, bias, cout_p, compute_dtype):
    """(Cout,Cin,3,3),(Cout,) -> w (3,3,Cin,Cout_p) [compute dtype], b (1,Cout_p) f32."""
    cout = weight_oihw.shape[0]
    w = jnp.transpose(weight_oihw, (2, 3, 1, 0))            # (kh, kw, Cin, Cout)
    w = jnp.pad(w, ((0, 0), (0, 0), (0, 0), (0, cout_p - cout)))
    if compute_dtype is not None:
        w = w.astype(compute_dtype)
    b = jnp.pad(bias, (0, cout_p - cout)).reshape(1, cout_p).astype(jnp.float32)
    return w, b


# --------------------------------------------------------------------------- #
# Forward pass
# --------------------------------------------------------------------------- #
def conv_relu_pallas(x_nchw, weight_oihw, bias, *, block_h=32, compute_dtype=None,
                     small_cin_threshold=SMALL_CIN):
    """TernausNet `Conv` forward: 3x3 conv (padding=1) + bias + ReLU.

    x_nchw:      (B, Cin, H, W)     float32 (NCHW, like nn.Conv2d)
    weight_oihw: (Cout, Cin, 3, 3)  float32
    bias:        (Cout,)            float32
    block_h:     H-tile height; auto-shrunk to fit the generation's VMEM budget.
                 Sweep 16/32/64 per generation.
    compute_dtype: e.g. jnp.bfloat16 for MXU feeds on any of v5e/v6e/v7x;
                 accumulation and the epilogue stay f32.
    returns:     (B, Cout, H, W)    float32
    """
    B, Cin, H, W = x_nchw.shape
    Cout = weight_oihw.shape[0]
    Cout_p = _round_up(Cout, LANE)
    in_dtype = compute_dtype if compute_dtype is not None else x_nchw.dtype
    item = jnp.dtype(in_dtype).itemsize

    small_cin = Cin <= small_cin_threshold
    fold_kw = (not small_cin) and (Cin % LANE == 0)
    budget = _vmem_budget()

    def need_bytes(th):
        out_b = 2 * th * W * Cout_p * 4
        w_b = 2 * 9 * Cin * Cout_p * item          # assume weights double-buffered
        if small_cin:
            in_b = 2 * th * W * 9 * Cin * item
            acc_b = th * W * Cout_p * 4
        else:
            in_b = 2 * (th + 2) * (W + 2) * Cin * item
            acc_b = 2 * _row_chunk(th, W, Cout_p) * W * Cout_p * 4
        return in_b + out_b + w_b + acc_b + 2 * Cout_p * 4

    TH = max(1, min(block_h, H))
    while TH > 1 and need_bytes(TH) > budget:
        TH = max(1, TH // 2)
    H_p = _round_up(H, TH)
    NT = H_p // TH
    need = need_bytes(TH)
    vmem_limit = int(max(16 << 20, min(budget, 2 * need), need + (2 << 20)))

    # NCHW -> NHWC (channels on lanes); pad the spatial halo once in HBM.
    x_nhwc = jnp.transpose(x_nchw, (0, 2, 3, 1))
    x_pad = jnp.pad(x_nhwc, ((0, 0), (1, 1 + (H_p - H)), (1, 1), (0, 0)))
    if compute_dtype is not None:
        x_pad = x_pad.astype(compute_dtype)

    w4, b2 = _pack_params(weight_oihw, bias, Cout_p, compute_dtype)

    grid = (B, NT)
    out_shape = jax.ShapeDtypeStruct((B, H_p, W, Cout_p), x_nchw.dtype)
    out_spec = pl.BlockSpec((1, TH, W, Cout_p), lambda b, t: (b, t, 0, 0))

    if small_cin:
        # First-layer path (e.g. Cin=3): im2col in the wrapper (9x duplication is
        # cheap at tiny Cin) -> one K=9*Cin matmul per tile, no in-kernel slicing.
        x_col = jnp.concatenate(
            [x_pad[:, kh:kh + H_p, kw:kw + W, :]
             for kh in range(3) for kw in range(3)], axis=-1)    # (B, H_p, W, 9*Cin)
        w_mat = w4.reshape(9 * Cin, Cout_p)
        out = pl.pallas_call(
            _im2col_kernel,
            out_shape=out_shape,
            grid_spec=pltpu.PrefetchScalarGridSpec(
                num_scalar_prefetch=0,
                grid=grid,
                in_specs=[
                    pl.BlockSpec((1, TH, W, 9 * Cin), lambda b, t: (b, t, 0, 0)),
                    pl.BlockSpec((9 * Cin, Cout_p), lambda b, t: (0, 0)),   # resident
                    pl.BlockSpec((1, Cout_p), lambda b, t: (0, 0)),         # resident
                ],
                out_specs=out_spec,
            ),
            compiler_params=pltpu.CompilerParams(
                dimension_semantics=("parallel", "parallel"),
                vmem_limit_bytes=vmem_limit),
        )(x_col, w_mat, b2)
    else:
        row_chunk = _row_chunk(TH, W, Cout_p)
        w_gen = w4.reshape(3, 3 * Cin, Cout_p) if fold_kw else w4
        w_spec = (pl.BlockSpec((3, 3 * Cin, Cout_p), lambda b, t: (0, 0, 0))
                  if fold_kw else
                  pl.BlockSpec((3, 3, Cin, Cout_p), lambda b, t: (0, 0, 0, 0)))
        kern = _make_general_kernel(TH, W, Cin, Cout_p, fold_kw, row_chunk)
        out = pl.pallas_call(
            kern,
            out_shape=out_shape,
            grid_spec=pltpu.PrefetchScalarGridSpec(
                num_scalar_prefetch=0,
                grid=grid,
                in_specs=[
                    pl.BlockSpec(memory_space=pl.ANY),   # padded NHWC stays in HBM
                    w_spec,                              # resident weights
                    pl.BlockSpec((1, Cout_p), lambda b, t: (0, 0)),   # resident bias
                ],
                out_specs=out_spec,
                scratch_shapes=[
                    pltpu.VMEM((2, TH + 2, W + 2, Cin), x_pad.dtype),  # halo windows
                    pltpu.SemaphoreType.DMA((2,)),
                ],
            ),
            compiler_params=pltpu.CompilerParams(
                # Batch across cores; H-tiles sequential so the manual double
                # buffer legally carries state across t.
                dimension_semantics=("parallel", "arbitrary"),
                vmem_limit_bytes=vmem_limit),
        )(x_pad, w_gen, b2)

    # Drop bottom-pad rows (last tile computes discarded rows from zero halo —
    # correct, just wasted work) and the lane padding of Cout; back to NCHW.
    out = out[:, :H, :, :Cout]
    return jnp.transpose(out, (0, 3, 1, 2))


def conv_relu_reference(x_nchw, weight_oihw, bias):
    """Pure-JAX reference (matches torch.nn.Conv2d(k=3, p=1) + ReLU)."""
    y = jax.lax.conv_general_dilated(
        x_nchw, weight_oihw,
        window_strides=(1, 1),
        padding=((1, 1), (1, 1)),
        dimension_numbers=("NCHW", "OIHW", "NCHW"))
    y = y + bias[None, :, None, None]
    return jnp.maximum(y, 0.0)


if __name__ == "__main__":
    root = jax.random.PRNGKey(0)
    keys = jax.random.split(root, 4)

    def make_case(key, B, Cin, Cout, H, W):
        kx, kw, kb = jax.random.split(key, 3)
        x = jax.random.normal(kx, (B, Cin, H, W), dtype=jnp.float32)
        bound = 1.0 / ((Cin * 9) ** 0.5)
        w = jax.random.uniform(kw, (Cout, Cin, 3, 3), jnp.float32,
                               minval=-bound, maxval=bound)
        b = jax.random.uniform(kb, (Cout,), jnp.float32,
                               minval=-bound, maxval=bound)
        return x, w, b

    # 1) Small-Cin (im2col) path, f32 — the module's shapes at toy size.
    x, w, b = make_case(keys[0], 2, 4, 8, 16, 16)
    ref = jax.block_until_ready(conv_relu_reference(x, w, b))
    out = jax.block_until_ready(conv_relu_pallas(x, w, b, block_h=8))
    assert out.shape == (2, 8, 16, 16), out.shape
    assert jnp.allclose(out, ref, atol=1e-4, rtol=1e-4), \
        float(jnp.max(jnp.abs(out - ref)))

    # 2) Same shapes, bf16 MXU feeds (valid on v5e/v6e/v7x); accumulation and
    #    epilogue stay f32.  Compare against an f32 reference on bf16-rounded
    #    inputs so only summation-order differences remain.
    x_b = x.astype(jnp.bfloat16).astype(jnp.float32)
    w_b = w.astype(jnp.bfloat16).astype(jnp.float32)
    ref_b = jax.block_until_ready(conv_relu_reference(x_b, w_b, b))
    out_bf16 = jax.block_until_ready(
        conv_relu_pallas(x, w, b, block_h=8, compute_dtype=jnp.bfloat16))
    assert out_bf16.shape == (2, 8, 16, 16), out_bf16.shape
    assert jnp.allclose(out_bf16, ref_b, atol=1e-3, rtol=1e-3), \
        float(jnp.max(jnp.abs(out_bf16 - ref_b)))

    # 3) General path with the kw-folded K=3*Cin contraction (Cin % 128 == 0)
    #    and the manual double-buffered halo DMA.
    x, w, b = make_case(keys[1], 2, 128, 64, 16, 16)
    ref = jax.block_until_ready(conv_relu_reference(x, w, b))
    out = jax.block_until_ready(conv_relu_pallas(x, w, b, block_h=8))
    assert out.shape == (2, 64, 16, 16), out.shape
    assert jnp.allclose(out, ref, atol=1e-4, rtol=1e-4), \
        float(jnp.max(jnp.abs(out - ref)))

    # 4) General path, 9-tap register accumulation (Cin not lane-aligned), with
    #    ragged H (exercises the bottom-pad tile slicing).
    x, w, b = make_case(keys[2], 2, 48, 32, 12, 16)
    ref = jax.block_until_ready(conv_relu_reference(x, w, b))
    out = jax.block_until_ready(conv_relu_pallas(x, w, b, block_h=8))
    assert out.shape == (2, 32, 12, 16), out.shape
    assert jnp.allclose(out, ref, atol=1e-4, rtol=1e-4), \
        float(jnp.max(jnp.abs(out - ref)))

    print("KERNEL_OK")
</pallas_src>

<mosaic_0001>
module attributes {stable_mosaic.version = 11 : i64} {
  func.func @_im2col_kernel(%arg0: i32, %arg1: i32, %arg2: memref<1x8x16x36xf32, #tpu.memory_space<vmem>>, %arg3: memref<36x128xf32, #tpu.memory_space<vmem>>, %arg4: memref<1x128xf32, #tpu.memory_space<vmem>>, %arg5: memref<1x8x16x128xf32, #tpu.memory_space<vmem>>) attributes {dimension_semantics = [#tpu.dimension_semantics<parallel>, #tpu.dimension_semantics<parallel>], iteration_bounds = array<i64: 2, 2>, scalar_prefetch = 0 : i64, scratch_operands = 0 : i64, tpu.core_type = #tpu.core_type<tc>, window_params = [{transform_indices = @transform_0, window_bounds = array<i64: 1, 8, 16, 36>}, {pipeline_mode = #tpu.pipeline_mode<synchronous>, transform_indices = @transform_1, window_bounds = array<i64: 36, 128>}, {pipeline_mode = #tpu.pipeline_mode<synchronous>, transform_indices = @transform_2, window_bounds = array<i64: 1, 128>}, {transform_indices = @transform_3, window_bounds = array<i64: 1, 8, 16, 128>}]} {
    %c0 = arith.constant 0 : index
    %c0_0 = arith.constant 0 : index
    %c0_1 = arith.constant 0 : index
    %c0_2 = arith.constant 0 : index
    %0 = vector.load %arg2[%c0, %c0_0, %c0_1, %c0_2] : memref<1x8x16x36xf32, #tpu.memory_space<vmem>>, vector<1x8x16x36xf32>
    %1 = vector.shape_cast %0 : vector<1x8x16x36xf32> to vector<128x36xf32>
    %c0_3 = arith.constant 0 : index
    %c0_4 = arith.constant 0 : index
    %2 = vector.load %arg3[%c0_3, %c0_4] : memref<36x128xf32, #tpu.memory_space<vmem>>, vector<36x128xf32>
    %cst = arith.constant dense<0.000000e+00> : vector<128x128xf32>
    %3 = tpu.matmul %1, %2, %cst {dimension_numbers = #tpu.dot_dimension_numbers<[1], [0], [0], [1], [0, 0, 1, 1], [], []>} : vector<128x36xf32>, vector<36x128xf32>, vector<128x128xf32> -> vector<128x128xf32>
    %c0_5 = arith.constant 0 : index
    %c0_6 = arith.constant 0 : index
    %4 = vector.load %arg4[%c0_5, %c0_6] : memref<1x128xf32, #tpu.memory_space<vmem>>, vector<1x128xf32>
    %5 = vector.broadcast %4 : vector<1x128xf32> to vector<128x128xf32>
    %6 = arith.addf %3, %5 : vector<128x128xf32>
    %cst_7 = arith.constant 0.000000e+00 : f32
    %7 = vector.broadcast %cst_7 : f32 to vector<128x128xf32>
    %8 = arith.maximumf %6, %7 : vector<128x128xf32>
    %9 = vector.shape_cast %8 : vector<128x128xf32> to vector<1x8x16x128xf32>
    %c0_8 = arith.constant 0 : index
    %c0_9 = arith.constant 0 : index
    %c0_10 = arith.constant 0 : index
    %c0_11 = arith.constant 0 : index
    %10 = vector.load %arg5[%c0_8, %c0_9, %c0_10, %c0_11] : memref<1x8x16x128xf32, #tpu.memory_space<vmem>>, vector<1x8x16x128xf32>
    tpu.vector_store %arg5[%c0_8, %c0_9, %c0_10, %c0_11], %9 {strides = array<i32>} : memref<1x8x16x128xf32, #tpu.memory_space<vmem>>, vector<1x8x16x128xf32>,
    return
  }
  func.func @transform_0(%arg0: i32, %arg1: i32) -> (i32, i32, i32, i32) {
    %c0_i32 = arith.constant 0 : i32
    %c0_i32_0 = arith.constant 0 : i32
    %c0_i32_1 = arith.constant 0 : i32
    return %arg0, %arg1, %c0_i32, %c0_i32_0 : i32, i32, i32, i32
  }
  func.func @transform_1(%arg0: i32, %arg1: i32) -> (i32, i32) {
    %c0_i32 = arith.constant 0 : i32
    %c0_i32_0 = arith.constant 0 : i32
    %c0_i32_1 = arith.constant 0 : i32
    return %c0_i32, %c0_i32_0 : i32, i32
  }
  func.func @transform_2(%arg0: i32, %arg1: i32) -> (i32, i32) {
    %c0_i32 = arith.constant 0 : i32
    %c0_i32_0 = arith.constant 0 : i32
    %c0_i32_1 = arith.constant 0 : i32
    return %c0_i32, %c0_i32_0 : i32, i32
  }
  func.func @transform_3(%arg0: i32, %arg1: i32) -> (i32, i32, i32, i32) {
    %c0_i32 = arith.constant 0 : i32
    %c0_i32_0 = arith.constant 0 : i32
    %c0_i32_1 = arith.constant 0 : i32
    return %arg0, %arg1, %c0_i32, %c0_i32_0 : i32, i32, i32, i32
  }
}

</mosaic_0001>

<llo_original>
// kernel: tpu_custom_call.1
$region0: #{tpu_custom_call.1}
  #allocation0 [shape = 'u32[]', space=smem, size = 0x4, offset = 0x4, fixed_abs, tag = 'smem constant byte address 0x4 - core index']
  #allocation1 [shape = 'u32[72,128]{1,0:T(1,128)}', space=vmem, size = 0x9000, scoped, tag = 'internal scratch']
  %s0 = inlined_call_operand.hbm [shape: f32[2,16,16,36], index: 0, kind: input, shape index: {}]
  %s1 = inlined_call_operand.hbm [shape: f32[36,128], index: 1, kind: input, shape index: {}]
  %s2 = inlined_call_operand.vmem [shape: f32[1,128], index: 2, kind: input, shape index: {}]
  %s3 = inlined_call_operand.hbm [shape: f32[2,16,16,128], index: 3, kind: output, shape index: {}]
  %s4 = sld [smem:[#allocation0]]
  $region53: #{tpu_custom_call.1} parent=0
    _
  %s6 = ssub.s32 1, %s4
  %s7 = scalar_select 0, %s6, %s4
  $region1: #{tpu_custom_call.1} parent=0
    #allocation2 [shape = 'u8[131072]{0}', space=vmem, size = 0x20000, scoped, tag = 'input window, operand 0']
    #allocation3 [shape = 's32[2]{0}', space=sflag, size = 0x8, scoped, tag = 'scoped memory for tpu_custom_call.1']
    #allocation4 [shape = 's32[2]{0}', space=sflag, size = 0x8, scoped, tag = 'scoped memory for tpu_custom_call.1']
    #allocation5 [shape = 'u8[20480]{0}', space=vmem, size = 0x5000, scoped, tag = 'input window, operand 1, single buffered']
    #allocation6 [shape = 's32[1]{0}', space=sflag, size = 0x4, scoped, tag = 'scoped memory for tpu_custom_call.1']
    #allocation7 [shape = 'u8[131072]{0}', space=vmem, size = 0x20000, scoped, tag = 'output window, operand 0']
    %8 = vsyncpa [#allocation3], 0
    %s9 = scalar_lea.sflag [#allocation3], 1
    %10 = vsyncpa %s9, 0
    %11 = vsyncpa [#allocation6], 0
    %12 = vsyncpa [#allocation4], 0
    %s13 = scalar_lea.sflag [#allocation4], 1
    %14 = vsyncpa %s13, 0
    loop: start=0, step=1, limit=6
    $region2: #{tpu_custom_call.1} parent=1 // loop_pre_header
      _
    $region3: #{tpu_custom_call.1} parent=1 // loop_header
      %s16 = sphi 0, %s20
      %p17 = scmp.ge.s32.totalorder %s16, 6
      %s23 = sphi 0, %s35
      %s24 = sphi 0, %s31
      %s25 = sphi 0, %s23
      %s26 = sphi 0, %s24
      %s27 = sphi 0, %s25
      %s28 = sphi 0, %s26
      %s40 = sphi 0, %s42
      %s43 = sphi 0, %s40
      %s44 = sphi 0, %s43
      %s60 = sphi 0, %s44
      %s64 = sphi 0, %s64
      %s66 = sphi 0, %s64
      %s67 = sphi 0, %s66
      %s81 = sphi 0, %s67
      %s85 = sphi 0, %s85
      %s87 = sphi 0, %s85
      %s88 = sphi 0, %s87
      %s102 = sphi 0, %s88
      %s110 = sphi 0, %s112
      %s113 = sphi 0, %s110
      %s114 = sphi 0, %s113
      %s130 = sphi 0, %s114
    $region4: #{tpu_custom_call.1} parent=1 // loop_header_branch
      %19 = sbr.rel (%p17) target = $region8
    $region5: #{tpu_custom_call.1} parent=1 // loop_body
      %s21 = ssub.s32 %s16, 1
      %s22 = ssub.s32 %s16, 2
      %s29 = sadd.s32 1, %s24
      %p30 = scmp.ge.s32.totalorder %s29, 2
      %s31 = scalar_select %p30, 0, %s29
      %s32 = sadd.s32 1, %s23
      %s33 = scalar_select %p30, %s32, %s23
      %p34 = scmp.ge.s32.totalorder %s33, 2
      %s35 = scalar_select %p34, 0, %s33
      %s36 = ssub.s32 %s23, %s35
      %s37 = ssub.s32 %s24, %s31
      %s38 = sor.u32 %s36, %s37
      %p39 = scmp.eq.s32.totalorder %s38, 0
      %s41 = sadd.s32 %s40, 1
      %s42 = scalar_select %p39, %s40, %s41
      %p45 = pneg %p39
      %p46 = scmp.eq.s32.totalorder %s16, 3
      %p47 = por %p45, %p46
      %p48 = scmp.ne.s32.totalorder %s40, %s43
      %p49 = scmp.eq.s32.totalorder %s16, 0
      %p50 = por %p48, %p49
      %p51 = scmp.ne.s32.totalorder %s40, %s43
      %p52 = scmp.eq.s32.totalorder %s21, 3
      %p53 = por %p51, %p52
      %p54 = scmp.ne.s32.totalorder %s43, %s44
      %p55 = scmp.eq.s32.totalorder %s21, 0
      %p56 = por %p54, %p55
      %p57 = scmp.ne.s32.totalorder %s43, %s44
      %p58 = scmp.eq.s32.totalorder %s22, 3
      %p59 = por %p57, %p58
      %p61 = scmp.ne.s32.totalorder %s44, %s60
      %p62 = scmp.eq.s32.totalorder %s22, 0
      %p63 = por %p61, %p62
      %s65 = sadd.s32 %s64, 1
      %p68 = scmp.eq.s32.totalorder %s16, 3
      %p69 = scmp.ne.s32.totalorder %s64, %s66
      %p70 = scmp.eq.s32.totalorder %s16, 0
      %p71 = por %p69, %p70
      %p72 = scmp.ne.s32.totalorder %s64, %s66
      %p73 = scmp.eq.s32.totalorder %s21, 3
      %p74 = por %p72, %p73
      %p75 = scmp.ne.s32.totalorder %s66, %s67
      %p76 = scmp.eq.s32.totalorder %s21, 0
      %p77 = por %p75, %p76
      %p78 = scmp.ne.s32.totalorder %s66, %s67
      %p79 = scmp.eq.s32.totalorder %s22, 3
      %p80 = por %p78, %p79
      %p82 = scmp.ne.s32.totalorder %s67, %s81
      %p83 = scmp.eq.s32.totalorder %s22, 0
      %p84 = por %p82, %p83
      %s86 = sadd.s32 %s85, 1
      %p89 = scmp.eq.s32.totalorder %s16, 3
      %p90 = scmp.ne.s32.totalorder %s85, %s87
      %p91 = scmp.eq.s32.totalorder %s16, 0
      %p92 = por %p90, %p91
      %p93 = scmp.ne.s32.totalorder %s85, %s87
      %p94 = scmp.eq.s32.totalorder %s21, 3
      %p95 = por %p93, %p94
      %p96 = scmp.ne.s32.totalorder %s87, %s88
      %p97 = scmp.eq.s32.totalorder %s21, 0
      %p98 = por %p96, %p97
      %p99 = scmp.ne.s32.totalorder %s87, %s88
      %p100 = scmp.eq.s32.totalorder %s22, 3
      %p101 = por %p99, %p100
      %p103 = scmp.ne.s32.totalorder %s88, %s102
      %p104 = scmp.eq.s32.totalorder %s22, 0
      %p105 = por %p103, %p104
      %s106 = ssub.s32 %s23, %s35
      %s107 = ssub.s32 %s24, %s31
      %s108 = sor.u32 %s106, %s107
      %p109 = scmp.eq.s32.totalorder %s108, 0
      %s111 = sadd.s32 %s110, 1
      %s112 = scalar_select %p109, %s110, %s111
      %p115 = pneg %p109
      %p116 = scmp.eq.s32.totalorder %s16, 3
      %p117 = por %p115, %p116
      %p118 = scmp.ne.s32.totalorder %s110, %s113
      %p119 = scmp.eq.s32.totalorder %s16, 0
      %p120 = por %p118, %p119
      %p121 = scmp.ne.s32.totalorder %s110, %s113
      %p122 = scmp.eq.s32.totalorder %s21, 3
      %p123 = por %p121, %p122
      %p124 = scmp.ne.s32.totalorder %s113, %s114
      %p125 = scmp.eq.s32.totalorder %s21, 0
      %p126 = por %p124, %p125
      %p127 = scmp.ne.s32.totalorder %s113, %s114
      %p128 = scmp.eq.s32.totalorder %s22, 3
      %p129 = por %p127, %p128
      %p131 = scmp.ne.s32.totalorder %s114, %s130
      %p132 = scmp.eq.s32.totalorder %s22, 0
      %p133 = por %p131, %p132
      %p134 = scmp.le.s32.totalorder 1, %s16
      %p135 = scmp.lt.s32.totalorder %s16, 5
      %p136 = pnand %p134, %p135
      %p137 = pneg %p136
      // Predicated region
      $region9: #{tpu_custom_call.1} parent=5 // pred_check
        _
      $region10: #{tpu_custom_call.1} parent=5 // pred_check_branch
        %139 = sbr.rel (%p136) target = $region12
      $region11: #{tpu_custom_call.1} parent=5 // pred_region
        %s140 = ssub.s32 %s16, 1
        // Predicated region
        $region13: #{tpu_custom_call.1} parent=11 // pred_check
          %p141 = pneg %p77
        $region14: #{tpu_custom_call.1} parent=11 // pred_check_branch
          %143 = sbr.rel (%p141) target = $region16
        $region15: #{tpu_custom_call.1} parent=11 // pred_region
          %145 = vsyncadd [#allocation6], 0
          %s146 = sshll.u32 %s1, 4
          %s147 = int_to_ptr.hbm [resolvable:$true] %s146
          %s148 = sshll.u32 [#allocation5], 4
          %s149 = int_to_ptr.vmem [resolvable:$true] %s148
          %154 = dma.hbm_to_vmem [thread:$0]  %s147, 640, %s149, [#allocation6], 128, 128, 8
        $region16: #{tpu_custom_call.1} parent=11 // pred_fallthru
          _
        // Predicated region
        $region17: #{tpu_custom_call.1} parent=11 // pred_check
          %p155 = pneg %p98
        $region18: #{tpu_custom_call.1} parent=11 // pred_check_branch
          %157 = sbr.rel (%p155) target = $region20
        $region19: #{tpu_custom_call.1} parent=11 // pred_region
          _
        $region20: #{tpu_custom_call.1} parent=11 // pred_fallthru
          _
      $region12: #{tpu_custom_call.1} parent=5 // pred_fallthru
        _
      %p158 = scmp.lt.s32.totalorder %s16, 4
      // Predicated region
      $region21: #{tpu_custom_call.1} parent=5 // pred_check
        %p159 = pneg %p158
      $region22: #{tpu_custom_call.1} parent=5 // pred_check_branch
        %161 = sbr.rel (%p159) target = $region24
      $region23: #{tpu_custom_call.1} parent=5 // pred_region
        // Predicated region
        $region25: #{tpu_custom_call.1} parent=23 // pred_check
          %p162 = pneg %p50
        $region26: #{tpu_custom_call.1} parent=23 // pred_check_branch
          %164 = sbr.rel (%p162) target = $region28
        $region27: #{tpu_custom_call.1} parent=23 // pred_region
          %s165 = sand.u32 %s40, 1
          %s166 = scalar_lea.sflag [#allocation3], %s165
          %s167 = sand.u32 %s40, 1
          %s168 = smul.addr %s167, 128
          %s169 = scalar_lea.vmem [#allocation2], %s168
          %s170 = smul.u32 8, %s24
          %172 = vsyncadd %s166, 0
          %s173 = smul.addr %s170, 2
          %s174 = smul.addr %s23, 32
          %s175 = sadd.s32 %s173, %s174
          %s176 = smul.addr %s175, 8
          %s177 = scalar_lea.hbm %s0, %s176
          %s178 = sshll.u32 %s177, 4
          %s179 = int_to_ptr.hbm [resolvable:$true] %s178
          %s180 = sshll.u32 %s169, 4
          %s181 = int_to_ptr.vmem [resolvable:$true] %s180
          %186 = dma.hbm_to_vmem [thread:$0]  %s179, 2048, %s181, %s166, 128, 128, 8
        $region28: #{tpu_custom_call.1} parent=23 // pred_fallthru
          _
      $region24: #{tpu_custom_call.1} parent=5 // pred_fallthru
        _
      %p187 = scmp.le.s32.totalorder 1, %s16
      %p188 = scmp.lt.s32.totalorder %s16, 5
      %p189 = pnand %p187, %p188
      %p190 = pneg %p189
      // Predicated region
      $region29: #{tpu_custom_call.1} parent=5 // pred_check
        _
      $region30: #{tpu_custom_call.1} parent=5 // pred_check_branch
        %192 = sbr.rel (%p189) target = $region32
      $region31: #{tpu_custom_call.1} parent=5 // pred_region
        %s193 = ssub.s32 %s16, 1
        %s194 = sand.u32 %s43, 1
        %s195 = scalar_lea.sflag [#allocation3], %s194
        %s196 = sand.u32 %s43, 1
        %s197 = smul.addr %s196, 128
        %s198 = scalar_lea.vmem [#allocation2], %s197
        // Predicated region
        $region33: #{tpu_custom_call.1} parent=31 // pred_check
          %p199 = pneg %p56
        $region34: #{tpu_custom_call.1} parent=31 // pred_check_branch
          %201 = sbr.rel (%p199) target = $region36
        $region35: #{tpu_custom_call.1} parent=31 // pred_region
          %203 = dma.done %s195, 2048
        $region36: #{tpu_custom_call.1} parent=31 // pred_fallthru
          _
        // Predicated region
        $region37: #{tpu_custom_call.1} parent=31 // pred_check
          %p204 = pneg %p77
        $region38: #{tpu_custom_call.1} parent=31 // pred_check_branch
          %206 = sbr.rel (%p204) target = $region40
        $region39: #{tpu_custom_call.1} parent=31 // pred_region
          %208 = dma.done [#allocation6], 640
        $region40: #{tpu_custom_call.1} parent=31 // pred_fallthru
          _
        %s209 = sand.u32 %s43, 1
        %s210 = scalar_lea.sflag [#allocation3], %s209
        %s211 = sand.u32 %s43, 1
        %s212 = smul.addr %s211, 128
        %s213 = scalar_lea.vmem [#allocation2], %s212
        %p214 = pneg %p56
        %p215 = pneg %p53
        %p216 = pneg %p77
        %p217 = pneg %p74
        %p218 = pneg %p98
        %p219 = pneg %p95
        %p220 = pneg %p126
        %p221 = pneg %p123
        %s222 = sand.u32 %s113, 1
        %s223 = scalar_lea.sflag [#allocation4], %s222
        %s224 = sand.u32 %s113, 1
        %s225 = smul.addr %s224, 128
        %s226 = scalar_lea.vmem [#allocation7], %s225
        %s227 = smul.u32 8, %s26
        %s228 = smul.u32 8, %s26
        %v229 = vld [vmem:[%s198] sm:$0xff]
        %v230 = vld [vmem:[%s198 + $0x8] sm:$0xff]
        %v231 = vld [vmem:[%s198 + $0x10] sm:$0xff]
        %v232 = vld [vmem:[%s198 + $0x18] sm:$0xff]
        %v233 = vld [vmem:[%s198 + $0x20] sm:$0xff]
        %v234 = vld [vmem:[%s198 + $0x28] sm:$0xff]
        %v235 = vld [vmem:[%s198 + $0x30] sm:$0xff]
        %v236 = vld [vmem:[%s198 + $0x38] sm:$0xff]
        %v237 = vld [vmem:[%s198 + $0x40] sm:$0xff]
        %v238 = vld [vmem:[%s198 + $0x48] sm:$0xff]
        %v239 = vld [vmem:[%s198 + $0x50] sm:$0xff]
        %v240 = vld [vmem:[%s198 + $0x58] sm:$0xff]
        %v241 = vld [vmem:[%s198 + $0x60] sm:$0xff]
        %v242 = vld [vmem:[%s198 + $0x68] sm:$0xff]
        %v243 = vld [vmem:[%s198 + $0x70] sm:$0xff]
        %v244 = vld [vmem:[%s198 + $0x78] sm:$0xff]
        %v245 = vld [vmem:[#allocation5] sm:$0xff]
        %v246 = vld [vmem:[#allocation5 + $0x8] sm:$0xff]
        %v247 = vld [vmem:[#allocation5 + $0x10] sm:$0xff]
        %v248 = vld [vmem:[#allocation5 + $0x18] sm:$0xff]
        %v249 = vld [vmem:[#allocation5 + $0x20] sm:$0xf]
        %v250 = vld [vmem:[%s2] sm:$0x1]
        %v252 = vperm.slane %v250, 0
        %vm254 = vcmask 293888
        %v256 = vsel %vm254, %v229, 0
        %v259 = vsel %vm254, %v230, 0
        %v262 = vsel %vm254, %v231, 0
        %v265 = vsel %vm254, %v232, 0
        %v268 = vsel %vm254, %v233, 0
        %v271 = vsel %vm254, %v234, 0
        %v274 = vsel %vm254, %v235, 0
        %v277 = vsel %vm254, %v236, 0
        %v280 = vsel %vm254, %v237, 0
        %v283 = vsel %vm254, %v238, 0
        %v286 = vsel %vm254, %v239, 0
        %v289 = vsel %vm254, %v240, 0
        %v292 = vsel %vm254, %v241, 0
        %v295 = vsel %vm254, %v242, 0
        %v298 = vsel %vm254, %v243, 0
        %v301 = vsel %vm254, %v244, 0
        %vm303 = vcmask 1043456
        %v305 = vsel %vm303, %v249, 0
        %307 = vmatpush.msra.mxu0 0.0
        %308 = vmatpush.msra.mxu0 0.0
        %309 = vmatpush.msra.mxu0 0.0
        %310 = vmatpush.msra.mxu0 0.0
        %311 = vmatpush.msra.mxu0 0.0
        %312 = vmatpush.msra.mxu0 0.0
        %313 = vmatpush.msra.mxu0 0.0
        %314 = vmatpush.msra.mxu0 0.0
        %315 = vmatpush.msra.mxu0 0.0
        %316 = vmatpush.msra.mxu0 0.0
        %317 = vmatpush.msra.mxu0 0.0
        %318 = vmatpush.msra.mxu0 %v305
        %319 = vmatpush.msra.mxu0 %v248
        %320 = vmatpush.msra.mxu0 %v247
        %321 = vmatpush.msra.mxu0 %v246
        %322 = vmatpush.msra.mxu0 %v245
        %323 = vmatmul.f32.gmra.mxu0 %v256
        %v324 = vpop.f32.mrf.mxu0
        %v325 = vadd.f32 %v252, %v324
        %326 = vmatmul.f32.gmra.mxu0 %v259
        %v327 = vpop.f32.mrf.mxu0
        %v328 = vadd.f32 %v252, %v327
        %329 = vmatmul.f32.gmra.mxu0 %v262
        %v330 = vpop.f32.mrf.mxu0
        %v331 = vadd.f32 %v252, %v330
        %332 = vmatmul.f32.gmra.mxu0 %v265
        %v333 = vpop.f32.mrf.mxu0
        %v334 = vadd.f32 %v252, %v333
        %335 = vmatmul.f32.gmra.mxu0 %v268
        %v336 = vpop.f32.mrf.mxu0
        %v337 = vadd.f32 %v252, %v336
        %338 = vmatmul.f32.gmra.mxu0 %v271
        %v339 = vpop.f32.mrf.mxu0
        %v340 = vadd.f32 %v252, %v339
        %341 = vmatmul.f32.gmra.mxu0 %v274
        %v342 = vpop.f32.mrf.mxu0
        %v343 = vadd.f32 %v252, %v342
        %344 = vmatmul.f32.gmra.mxu0 %v277
        %v345 = vpop.f32.mrf.mxu0
        %v346 = vadd.f32 %v252, %v345
        %347 = vmatmul.f32.gmra.mxu0 %v280
        %v348 = vpop.f32.mrf.mxu0
        %v349 = vadd.f32 %v252, %v348
        %350 = vmatmul.f32.gmra.mxu0 %v283
        %v351 = vpop.f32.mrf.mxu0
        %v352 = vadd.f32 %v252, %v351
        %353 = vmatmul.f32.gmra.mxu0 %v286
        %v354 = vpop.f32.mrf.mxu0
        %v355 = vadd.f32 %v252, %v354
        %356 = vmatmul.f32.gmra.mxu0 %v289
        %v357 = vpop.f32.mrf.mxu0
        %v358 = vadd.f32 %v252, %v357
        %359 = vmatmul.f32.gmra.mxu0 %v292
        %v360 = vpop.f32.mrf.mxu0
        %v361 = vadd.f32 %v252, %v360
        %362 = vmatmul.f32.gmra.mxu0 %v295
        %v363 = vpop.f32.mrf.mxu0
        %v364 = vadd.f32 %v252, %v363
        %365 = vmatmul.f32.gmra.mxu0 %v298
        %v366 = vpop.f32.mrf.mxu0
        %v367 = vadd.f32 %v252, %v366
        %368 = vmatmul.f32.gmra.mxu0 %v301
        %v369 = vpop.f32.mrf.mxu0
        %v370 = vadd.f32 %v252, %v369
        %371 = vdwg.mxu0
        %v372 = vmax.f32 %v325, 0.0
        %v373 = vmax.f32 %v328, 0.0
        %v374 = vmax.f32 %v331, 0.0
        %v375 = vmax.f32 %v334, 0.0
        %v376 = vmax.f32 %v337, 0.0
        %v377 = vmax.f32 %v340, 0.0
        %v378 = vmax.f32 %v343, 0.0
        %v379 = vmax.f32 %v346, 0.0
        %v380 = vmax.f32 %v349, 0.0
        %v381 = vmax.f32 %v352, 0.0
        %v382 = vmax.f32 %v355, 0.0
        %v383 = vmax.f32 %v358, 0.0
        %v384 = vmax.f32 %v361, 0.0
        %v385 = vmax.f32 %v364, 0.0
        %v386 = vmax.f32 %v367, 0.0
        %v387 = vmax.f32 %v370, 0.0
        %388 = vst [vmem:[%s226] sm:$0xff] %v372
        %389 = vst [vmem:[%s226 + $0x8] sm:$0xff] %v373
        %390 = vst [vmem:[%s226 + $0x10] sm:$0xff] %v374
        %391 = vst [vmem:[%s226 + $0x18] sm:$0xff] %v375
        %392 = vst [vmem:[%s226 + $0x20] sm:$0xff] %v376
        %393 = vst [vmem:[%s226 + $0x28] sm:$0xff] %v377
        %394 = vst [vmem:[%s226 + $0x30] sm:$0xff] %v378
        %395 = vst [vmem:[%s226 + $0x38] sm:$0xff] %v379
        %396 = vst [vmem:[%s226 + $0x40] sm:$0xff] %v380
        %397 = vst [vmem:[%s226 + $0x48] sm:$0xff] %v381
        %398 = vst [vmem:[%s226 + $0x50] sm:$0xff] %v382
        %399 = vst [vmem:[%s226 + $0x58] sm:$0xff] %v383
        %400 = vst [vmem:[%s226 + $0x60] sm:$0xff] %v384
        %401 = vst [vmem:[%s226 + $0x68] sm:$0xff] %v385
        %402 = vst [vmem:[%s226 + $0x70] sm:$0xff] %v386
        %403 = vst [vmem:[%s226 + $0x78] sm:$0xff] %v387
        %s404 = sand.u32 %s113, 1
        %s405 = scalar_lea.sflag [#allocation4], %s404
        %s406 = sand.u32 %s113, 1
        %s407 = smul.addr %s406, 128
        %s408 = scalar_lea.vmem [#allocation7], %s407
        // Predicated region
        $region41: #{tpu_custom_call.1} parent=31 // pred_check
          %p409 = pneg %p123
        $region42: #{tpu_custom_call.1} parent=31 // pred_check_branch
          %411 = sbr.rel (%p409) target = $region44
        $region43: #{tpu_custom_call.1} parent=31 // pred_region
          %s412 = smul.u32 8, %s26
          %414 = vsyncadd %s405, 0
          %s415 = smul.addr %s412, 2
          %s416 = smul.addr %s25, 32
          %s417 = sadd.s32 %s415, %s416
          %s418 = smul.addr %s417, 8
          %s419 = scalar_lea.hbm %s3, %s418
          %s420 = sshll.u32 %s408, 4
          %s421 = int_to_ptr.vmem [resolvable:$true] %s420
          %s422 = sshll.u32 %s419, 4
          %s423 = int_to_ptr.hbm [resolvable:$true] %s422
          %428 = dma.vmem_to_hbm [thread:$0]  %s421, 2048, %s423, %s405, 128, 128, 8
        $region44: #{tpu_custom_call.1} parent=31 // pred_fallthru
          _
      $region32: #{tpu_custom_call.1} parent=5 // pred_fallthru
        _
      %p429 = scmp.le.s32.totalorder 2, %s16
      // Predicated region
      $region45: #{tpu_custom_call.1} parent=5 // pred_check
        %p430 = pneg %p429
      $region46: #{tpu_custom_call.1} parent=5 // pred_check_branch
        %432 = sbr.rel (%p430) target = $region48
      $region47: #{tpu_custom_call.1} parent=5 // pred_region
        %s433 = ssub.s32 %s16, 2
        // Predicated region
        $region49: #{tpu_custom_call.1} parent=47 // pred_check
          %p434 = pneg %p129
        $region50: #{tpu_custom_call.1} parent=47 // pred_check_branch
          %436 = sbr.rel (%p434) target = $region52
        $region51: #{tpu_custom_call.1} parent=47 // pred_region
          %s437 = sand.u32 %s114, 1
          %s438 = scalar_lea.sflag [#allocation4], %s437
          %s439 = sand.u32 %s114, 1
          %s440 = smul.addr %s439, 128
          %s441 = scalar_lea.vmem [#allocation7], %s440
          %443 = dma.done %s438, 2048
        $region52: #{tpu_custom_call.1} parent=47 // pred_fallthru
          _
      $region48: #{tpu_custom_call.1} parent=5 // pred_fallthru
        _
    $region6: #{tpu_custom_call.1} parent=1 // loop_footer
      %s20 = sadd.s32 1, %s16
    $region7: #{tpu_custom_call.1} parent=1 // loop_footer_branch
      %15 = sbr.rel target = $region3
    $region8: #{tpu_custom_call.1} parent=1 // loop_exit
      _
    %444 = vsyncpa [#allocation3], 1
    %s445 = scalar_lea.sflag [#allocation3], 1
    %446 = vsyncpa %s445, 1
    %447 = vsyncpa [#allocation6], 1
    %448 = vsyncpa [#allocation4], 1
    %s449 = scalar_lea.sflag [#allocation4], 1
    %450 = vsyncpa %s449, 1

</llo_original>
